<compile_context>
chip_gen: v5e
topology: v5e:2x2
jax: 0.10.0
libtpu: 0.0.40
codegen_flags: <defaults>
</compile_context>

<pallas_src>
import functools

import jax
import jax.numpy as jnp
from jax import lax
from jax.experimental import pallas as pl
from jax.experimental.pallas import tpu as pltpu

NEG_SLOPE = 0.01          # PyTorch nn.LeakyReLU default negative_slope
_LANE = 128
_SUBLANE = 8


def _round_up(n, m):
    return ((n + m - 1) // m) * m


def _cdiv(a, b):
    return -(-a // b)


def _vmem_limit_bytes():
    """Generation-aware scoped-VMEM limit (v7x: ~48 MiB; v5e/v6e: ~96 MiB)."""
    cap = 64 * 1024 * 1024
    try:
        info = pltpu.get_tpu_info()
        cap = int(getattr(info, "vmem_capacity_bytes", cap)) or cap
    except Exception:
        pass
    return max(32 * 1024 * 1024, min(cap * 3 // 4, 100 * 1024 * 1024))


def _choose_tiles(batch, d_pad, in_itemsize, out_itemsize, budget, max_w_block_bytes):
    """Pick (tile_b, tile_n) so the double-buffered working set fits `budget`."""
    w_bufs = 2  # Pallas double-buffers every input by default.

    # --- N (output-column) tiling: keep the resident weight slab under the cap.
    w_cap = budget // 2
    if max_w_block_bytes is not None:
        w_cap = min(w_cap, max_w_block_bytes)
    lanes = d_pad // _LANE
    tile_n = _LANE
    for k in range(1, lanes + 1):          # candidates are divisors of d_pad
        if lanes % k:
            continue
        cand = d_pad // k                  # multiple of 128, divides d_pad
        if w_bufs * d_pad * cand * in_itemsize <= w_cap:
            tile_n = cand
            break
    # TODO(synk): prefer 256-aligned tile_n on v6e/v7x (2x256^2 MXU) when splitting.

    # --- batch tile: largest multiple of 8 whose x + out tiles fit what's left.
    w_bytes = w_bufs * d_pad * tile_n * in_itemsize
    per_row = 2 * d_pad * in_itemsize + 2 * tile_n * out_itemsize
    avail = max(budget - w_bytes, per_row * _SUBLANE)
    tile_b = (avail // per_row) // _SUBLANE * _SUBLANE
    tile_b = max(_SUBLANE, min(tile_b, 1024, _round_up(batch, _SUBLANE)))
    # Keep >=2 batch grid steps for larger B so v7x's 2 TCs can split the axis.
    if batch >= 2 * _SUBLANE:
        tile_b = min(tile_b, _round_up(_cdiv(batch, 2), _SUBLANE))
    return int(tile_b), int(tile_n)


def _make_kernel(tile_n, full_n):
    def kernel(x_ref, w_ref, b_ref, o_ref):
        x = x_ref[...]                                           # (tile_b, d_pad)
        # x @ W^T done natively on the MXU (no transposed weight copy in HBM).
        y = lax.dot_general(x, w_ref[...],
                            dimension_numbers=(((1,), (1,)), ((), ())),
                            preferred_element_type=jnp.float32)  # (tile_b, tile_n)
        y = y + b_ref[...]                                       # bias (f32) broadcast
        y = jnp.where(y > 0, y, NEG_SLOPE * y)                   # LeakyReLU on the VPU
        if full_n:
            x_res = x
        else:
            col = pl.multiple_of(pl.program_id(0) * tile_n, _LANE)
            x_res = x_ref[:, pl.ds(col, tile_n)]                 # residual slice
        o_ref[...] = (y + x_res.astype(jnp.float32)).astype(o_ref.dtype)
    return kernel


@functools.lru_cache(maxsize=None)
def _build_skipblock_fn(B, D, in_dtype_name, out_dtype_name, use_pallas,
                        max_w_block_bytes):
    in_dtype = jnp.dtype(in_dtype_name)
    out_dtype = jnp.dtype(out_dtype_name)

    if not use_pallas:
        # Small-problem bypass: plain fused XLA expression (pad/launch overhead
        # of the kernel dominates at tiny D), same casts as the kernel path.
        @jax.jit
        def fused(x, weight, bias):
            xin = x.astype(in_dtype)
            y = lax.dot_general(xin, weight.astype(in_dtype),
                                dimension_numbers=(((1,), (1,)), ((), ())),
                                preferred_element_type=jnp.float32)
            y = y + bias.astype(jnp.float32)
            y = jnp.where(y > 0, y, NEG_SLOPE * y)
            return (y + xin.astype(jnp.float32)).astype(out_dtype)
        return fused

    d_pad = _round_up(D, _LANE)                  # lane-dense last dim
    vmem_limit = _vmem_limit_bytes()
    budget = vmem_limit - 4 * 1024 * 1024        # headroom for sems / internals
    tile_b, tile_n = _choose_tiles(B, d_pad, in_dtype.itemsize, out_dtype.itemsize,
                                   budget, max_w_block_bytes)
    nn = d_pad // tile_n
    nb = _cdiv(B, tile_b)

    kernel = _make_kernel(tile_n, full_n=(nn == 1))
    pallas_fn = pl.pallas_call(
        kernel,
        out_shape=jax.ShapeDtypeStruct((B, d_pad), out_dtype),
        grid_spec=pltpu.PrefetchScalarGridSpec(
            num_scalar_prefetch=0,
            grid=(nn, nb),                       # weight tile outer, batch inner
            in_specs=[
                pl.BlockSpec((tile_b, d_pad), lambda j, i: (i, 0)),   # x (full K)
                pl.BlockSpec((tile_n, d_pad), lambda j, i: (j, 0)),   # W rows j
                pl.BlockSpec((1, tile_n), lambda j, i: (0, j)),       # bias
            ],
            out_specs=pl.BlockSpec((tile_b, tile_n), lambda j, i: (i, j)),
        ),
        compiler_params=pltpu.CompilerParams(
            dimension_semantics=("parallel", "parallel"),
            vmem_limit_bytes=int(vmem_limit),
        ),
    )

    @jax.jit
    def run(x, weight, bias):
        # All padding / casting fuses with the pallas_call under one jit.
        xp = jnp.pad(x, ((0, 0), (0, d_pad - D))).astype(in_dtype)
        wp = jnp.pad(weight, ((0, d_pad - D), (0, d_pad - D))).astype(in_dtype)
        bp = jnp.pad(bias, (0, d_pad - D)).reshape(1, d_pad).astype(jnp.float32)
        out = pallas_fn(xp, wp, bp)
        return out[:, :D]
    return run


def skip_block(x, weight, bias, repeat=1, use_bf16=False, force_pallas=False,
               max_weight_block_bytes=None):
    """PyTorch SkipBlock.forward.

    The PyTorch loop re-reads the ORIGINAL `x` every iteration, so all `repeat`
    iterations produce the same value: compute once for repeat >= 1, return x
    unchanged for repeat == 0.  `max_weight_block_bytes` is a test hook that
    forces the N-axis weight tiling at small D.
    """
    B, D = x.shape
    if repeat <= 0:
        return x
    in_dtype = jnp.dtype(jnp.bfloat16) if use_bf16 else jnp.dtype(x.dtype)
    out_dtype = in_dtype
    small = (D <= 256 and B <= 1024) and not force_pallas
    fn = _build_skipblock_fn(int(B), int(D), in_dtype.name, out_dtype.name,
                             not small, max_weight_block_bytes)
    return fn(x, weight, bias)


def _reference(x, weight, bias, repeat=1):
    out = x
    for _ in range(repeat):
        y = x @ weight.T + bias
        y = jnp.where(y > 0, y, NEG_SLOPE * y)
        out = y + x
    return out


if __name__ == "__main__":
    key = jax.random.PRNGKey(0)
    k_x, k_w, k_b, k_x2 = jax.random.split(key, 4)

    batch, dim, repeat = 8, 32, 2
    x = jax.random.normal(k_x, (batch, dim), dtype=jnp.float32)
    # Deterministic init mimicking nn.Linear default: U(-1/sqrt(d), 1/sqrt(d)).
    bound = 1.0 / float(dim) ** 0.5
    weight = jax.random.uniform(k_w, (dim, dim), minval=-bound, maxval=bound,
                                dtype=jnp.float32)
    bias = jax.random.uniform(k_b, (dim,), minval=-bound, maxval=bound,
                              dtype=jnp.float32)

    ref = _reference(x, weight, bias, repeat=repeat)

    # f32 Pallas path (matches PyTorch numerics).
    out = jax.block_until_ready(
        skip_block(x, weight, bias, repeat=repeat, force_pallas=True))
    assert out.shape == (batch, dim)
    assert jnp.allclose(out, ref, atol=1e-4, rtol=1e-4), "f32 kernel mismatch"

    # repeat=0: loop body never runs -> output is x.
    out0 = jax.block_until_ready(skip_block(x, weight, bias, repeat=0))
    assert jnp.array_equal(out0, x), "repeat=0 should return x"

    # bf16-input / f32-accumulate path (all generations), bf16 output.
    out_bf16 = jax.block_until_ready(
        skip_block(x, weight, bias, repeat=repeat, use_bf16=True, force_pallas=True))
    assert out_bf16.dtype == jnp.bfloat16
    assert jnp.allclose(out_bf16.astype(jnp.float32), ref, atol=5e-2, rtol=5e-2), \
        "bf16 kernel mismatch"

    # Small-problem XLA bypass path.
    out_xla = jax.block_until_ready(skip_block(x, weight, bias, repeat=repeat))
    assert jnp.allclose(out_xla, ref, atol=1e-4, rtol=1e-4), "bypass mismatch"

    # Exercise the N-axis weight tiling + ragged batch grid on a moderate shape.
    B2, D2 = 260, 256
    x2 = jax.random.normal(k_x2, (B2, D2), dtype=jnp.float32)
    bound2 = 1.0 / float(D2) ** 0.5
    k_w2, k_b2 = jax.random.split(k_w)
    w2 = jax.random.uniform(k_w2, (D2, D2), minval=-bound2, maxval=bound2,
                            dtype=jnp.float32)
    bias2 = jax.random.uniform(k_b2, (D2,), minval=-bound2, maxval=bound2,
                               dtype=jnp.float32)
    ref2 = _reference(x2, w2, bias2, repeat=1)
    out2 = jax.block_until_ready(
        skip_block(x2, w2, bias2, repeat=1, force_pallas=True,
                   max_weight_block_bytes=300_000))   # forces tile_n=128 -> 2 N blocks
    assert out2.shape == (B2, D2)
    assert jnp.allclose(out2, ref2, atol=1e-4, rtol=1e-4), "tiled kernel mismatch"

    print("KERNEL_OK")
</pallas_src>

<mosaic_0001>
module attributes {stable_mosaic.version = 11 : i64} {
  func.func @kernel(%arg0: i32, %arg1: i32, %arg2: memref<8x128xf32, #tpu.memory_space<vmem>>, %arg3: memref<128x128xf32, #tpu.memory_space<vmem>>, %arg4: memref<1x128xf32, #tpu.memory_space<vmem>>, %arg5: memref<8x128xf32, #tpu.memory_space<vmem>>) attributes {dimension_semantics = [#tpu.dimension_semantics<parallel>, #tpu.dimension_semantics<parallel>], iteration_bounds = array<i64: 1, 1>, scalar_prefetch = 0 : i64, scratch_operands = 0 : i64, tpu.core_type = #tpu.core_type<tc>, window_params = [{transform_indices = @transform_0, window_bounds = array<i64: 8, 128>}, {transform_indices = @transform_1, window_bounds = array<i64: 128, 128>}, {transform_indices = @transform_2, window_bounds = array<i64: 1, 128>}, {transform_indices = @transform_3, window_bounds = array<i64: 8, 128>}]} {
    %c0 = arith.constant 0 : index
    %c0_0 = arith.constant 0 : index
    %0 = vector.load %arg2[%c0, %c0_0] : memref<8x128xf32, #tpu.memory_space<vmem>>, vector<8x128xf32>
    %c0_1 = arith.constant 0 : index
    %c0_2 = arith.constant 0 : index
    %1 = vector.load %arg3[%c0_1, %c0_2] : memref<128x128xf32, #tpu.memory_space<vmem>>, vector<128x128xf32>
    %cst = arith.constant dense<0.000000e+00> : vector<8x128xf32>
    %2 = tpu.matmul %0, %1, %cst {dimension_numbers = #tpu.dot_dimension_numbers<[1], [1], [0], [0], [0, 0, 1, 0], [], []>} : vector<8x128xf32>, vector<128x128xf32>, vector<8x128xf32> -> vector<8x128xf32>
    %c0_3 = arith.constant 0 : index
    %c0_4 = arith.constant 0 : index
    %3 = vector.load %arg4[%c0_3, %c0_4] : memref<1x128xf32, #tpu.memory_space<vmem>>, vector<1x128xf32>
    %4 = vector.broadcast %3 : vector<1x128xf32> to vector<8x128xf32>
    %5 = arith.addf %2, %4 : vector<8x128xf32>
    %cst_5 = arith.constant 0.000000e+00 : f32
    %6 = vector.broadcast %cst_5 : f32 to vector<8x128xf32>
    %7 = arith.cmpf ogt, %5, %6 : vector<8x128xf32>
    %cst_6 = arith.constant 0.00999999977 : f32
    %8 = vector.broadcast %cst_6 : f32 to vector<8x128xf32>
    %9 = arith.mulf %8, %5 : vector<8x128xf32>
    %10 = arith.select %7, %5, %9 : vector<8x128xi1>, vector<8x128xf32>
    %11 = arith.addf %10, %0 : vector<8x128xf32>
    %c0_7 = arith.constant 0 : index
    %c0_8 = arith.constant 0 : index
    %12 = vector.load %arg5[%c0_7, %c0_8] : memref<8x128xf32, #tpu.memory_space<vmem>>, vector<8x128xf32>
    tpu.vector_store %arg5[%c0_7, %c0_8], %11 {strides = array<i32>} : memref<8x128xf32, #tpu.memory_space<vmem>>, vector<8x128xf32>,
    return
  }
  func.func @transform_0(%arg0: i32, %arg1: i32) -> (i32, i32) {
    %c0_i32 = arith.constant 0 : i32
    %c0_i32_0 = arith.constant 0 : i32
    return %arg1, %c0_i32 : i32, i32
  }
  func.func @transform_1(%arg0: i32, %arg1: i32) -> (i32, i32) {
    %c0_i32 = arith.constant 0 : i32
    %c0_i32_0 = arith.constant 0 : i32
    return %arg0, %c0_i32 : i32, i32
  }
  func.func @transform_2(%arg0: i32, %arg1: i32) -> (i32, i32) {
    %c0_i32 = arith.constant 0 : i32
    %c0_i32_0 = arith.constant 0 : i32
    return %c0_i32, %arg0 : i32, i32
  }
  func.func @transform_3(%arg0: i32, %arg1: i32) -> (i32, i32) {
    %c0_i32 = arith.constant 0 : i32
    return %arg1, %arg0 : i32, i32
  }
}

</mosaic_0001>

<llo_original>
// kernel: run.1
$region0: #{run.1}
  #allocation0 [shape = 'u32[]', space=smem, size = 0x4, offset = 0x4, fixed_abs, tag = 'smem constant byte address 0x4 - core index']
  #allocation1 [shape = 'u32[72,128]{1,0:T(1,128)}', space=vmem, size = 0x9000, scoped, tag = 'internal scratch']
  %s0 = inlined_call_operand.vmem [shape: f32[8,128], index: 0, kind: input, shape index: {}]
  %s1 = inlined_call_operand.vmem [shape: f32[128,128], index: 1, kind: input, shape index: {}]
  %s2 = inlined_call_operand.vmem [shape: f32[1,128], index: 2, kind: input, shape index: {}]
  %s3 = inlined_call_operand.hbm [shape: f32[8,128], index: 3, kind: output, shape index: {}]
  %s4 = sld [smem:[#allocation0]]
  $region22: #{run.1} parent=0
    _
  %s6 = ssub.s32 1, %s4
  %s7 = scalar_select 0, %s6, %s4
  $region1: #{run.1} parent=0
    #allocation2 [shape = 'u8[4096]{0}', space=vmem, size = 0x1000, scoped, tag = 'output window, operand 0, single buffered']
    #allocation3 [shape = 's32[1]{0}', space=sflag, size = 0x4, scoped, tag = 'scoped memory for run.1']
    %8 = vsyncpa [#allocation3], 0
    // Predicated region
    $region2: #{run.1} parent=1 // pred_check
      _
    $region3: #{run.1} parent=1 // pred_check_branch
      %10 = sbr.rel (0) target = $region5
    $region4: #{run.1} parent=1 // pred_region
      _
    $region5: #{run.1} parent=1 // pred_fallthru
      _
    // Predicated region
    $region6: #{run.1} parent=1 // pred_check
      _
    $region7: #{run.1} parent=1 // pred_check_branch
      %12 = sbr.rel (0) target = $region9
    $region8: #{run.1} parent=1 // pred_region
      _
    $region9: #{run.1} parent=1 // pred_fallthru
      _
    // Predicated region
    $region10: #{run.1} parent=1 // pred_check
      _
    $region11: #{run.1} parent=1 // pred_check_branch
      %14 = sbr.rel (0) target = $region13
    $region12: #{run.1} parent=1 // pred_region
      _
    $region13: #{run.1} parent=1 // pred_fallthru
      _
    %v15 = vld [vmem:[%s0] sm:$0xff]
    %v16 = vld [vmem:[%s1] sm:$0xff]
    %v17 = vld [vmem:[%s1 + $0x8] sm:$0xff]
    %v18 = vld [vmem:[%s1 + $0x10] sm:$0xff]
    %v19 = vld [vmem:[%s1 + $0x18] sm:$0xff]
    %v20 = vld [vmem:[%s1 + $0x20] sm:$0xff]
    %v21 = vld [vmem:[%s1 + $0x28] sm:$0xff]
    %v22 = vld [vmem:[%s1 + $0x30] sm:$0xff]
    %v23 = vld [vmem:[%s1 + $0x38] sm:$0xff]
    %v24 = vld [vmem:[%s1 + $0x40] sm:$0xff]
    %v25 = vld [vmem:[%s1 + $0x48] sm:$0xff]
    %v26 = vld [vmem:[%s1 + $0x50] sm:$0xff]
    %v27 = vld [vmem:[%s1 + $0x58] sm:$0xff]
    %v28 = vld [vmem:[%s1 + $0x60] sm:$0xff]
    %v29 = vld [vmem:[%s1 + $0x68] sm:$0xff]
    %v30 = vld [vmem:[%s1 + $0x70] sm:$0xff]
    %v31 = vld [vmem:[%s1 + $0x78] sm:$0xff]
    %v32 = vld [vmem:[%s2] sm:$0x1]
    %v34 = vperm.slane %v32, 0
    %36 = vmatpush.xpose.msra.mxu0 %v31
    %37 = vmatpush.xpose.msra.mxu0 %v30
    %38 = vmatpush.xpose.msra.mxu0 %v29
    %39 = vmatpush.xpose.msra.mxu0 %v28
    %40 = vmatpush.xpose.msra.mxu0 %v27
    %41 = vmatpush.xpose.msra.mxu0 %v26
    %42 = vmatpush.xpose.msra.mxu0 %v25
    %43 = vmatpush.xpose.msra.mxu0 %v24
    %44 = vmatpush.xpose.msra.mxu0 %v23
    %45 = vmatpush.xpose.msra.mxu0 %v22
    %46 = vmatpush.xpose.msra.mxu0 %v21
    %47 = vmatpush.xpose.msra.mxu0 %v20
    %48 = vmatpush.xpose.msra.mxu0 %v19
    %49 = vmatpush.xpose.msra.mxu0 %v18
    %50 = vmatpush.xpose.msra.mxu0 %v17
    %51 = vmatpush.xpose.msra.mxu0 %v16
    %52 = vmatmul.f32.gmra.mxu0 %v15
    %v53 = vpop.f32.mrf.mxu0
    %v54 = vadd.f32 %v34, %v53
    %55 = vdwg.mxu0
    %vm56 = vcmp.gt.f32.partialorder %v54, 0.0
    %v57 = vmul.f32 %v54, 0.01
    %v58 = vsel %vm56, %v54, %v57
    %v59 = vadd.f32 %v58, %v15
    %60 = vst [vmem:[#allocation2] sm:$0xff] %v59
    // Predicated region
    $region14: #{run.1} parent=1 // pred_check
      _
    $region15: #{run.1} parent=1 // pred_check_branch
      %62 = sbr.rel (0) target = $region17
    $region16: #{run.1} parent=1 // pred_region
      %64 = vsyncadd [#allocation3], 0
      %s66 = sshll.u32 [#allocation2], 4
      %s67 = int_to_ptr.vmem [resolvable:$true] %s66
      %s68 = sshll.u32 %s3, 4
      %s69 = int_to_ptr.hbm [resolvable:$true] %s68
      %71 = dma.vmem_to_hbm [thread:$0]  %s67, 128, %s69, [#allocation3]
    $region17: #{run.1} parent=1 // pred_fallthru
      _
    // Predicated region
    $region18: #{run.1} parent=1 // pred_check
      _
    $region19: #{run.1} parent=1 // pred_check_branch
      %73 = sbr.rel (0) target = $region21
    $region20: #{run.1} parent=1 // pred_region
      %75 = dma.done [#allocation3], 128
    $region21: #{run.1} parent=1 // pred_fallthru
      _
    %76 = vsyncpa [#allocation3], 1

</llo_original>
